<compile_context>
chip_gen: v6e
topology: v6e:2x2x1
jax: 0.10.0
libtpu: 0.0.40
codegen_flags: <defaults>
</compile_context>

<pallas_src>
import jax
import jax.numpy as jnp
from jax.experimental import pallas as pl
from jax.experimental.pallas import tpu as pltpu


def _alpha_htanh_kernel(x_ref, a_ref, o_ref):
    x = x_ref[...]          # (br, bn), native dtype
    a = a_ref[...]          # (br, 1): |alpha| per row; broadcasts over lanes
    o_ref[...] = jnp.minimum(jnp.maximum(x, -a), a)


def _block_sizes(R, HW, itemsize, target_bytes=4 * 1024 * 1024):
    """Pick (br, bn) blocks: bn multiple of 128 (or full HW when HW < 128),
    br multiple of the dtype sublane pack (or full R), ~target_bytes per block."""
    LANE = 128
    pack = {4: 8, 2: 16, 1: 32}.get(itemsize, 8)

    if HW < LANE:
        bn = HW  # full lane dim (allowed even if not a multiple of 128)
    else:
        hw_ceil = ((HW + LANE - 1) // LANE) * LANE
        bn_budget = max(LANE, (target_bytes // (pack * itemsize)) // LANE * LANE)
        bn = min(hw_ceil, bn_budget)

    br_budget = max(pack, (target_bytes // (bn * itemsize)) // pack * pack)
    br = R if br_budget >= R else br_budget  # full dim always allowed
    return br, bn


def alpha_htanh_channel(x, alpha):
    """x: (N, C, H, W), alpha: (C,) -> (N, C, H, W) channel-wise clamp to +/-|alpha|."""
    N, C, H, W = x.shape
    HW = H * W
    R = N * C
    dtype = x.dtype
    itemsize = jnp.dtype(dtype).itemsize

    # Flatten: rows = (batch, channel), lanes = spatial. No padding / slicing passes.
    x2 = x.reshape(R, HW)

    # |alpha| hoisted here; broadcast across the batch so every row has its threshold.
    a_rows = jnp.broadcast_to(jnp.abs(alpha).astype(dtype)[None, :], (N, C)).reshape(R, 1)

    br, bn = _block_sizes(R, HW, itemsize)
    grid = (pl.cdiv(R, br), pl.cdiv(HW, bn))

    # VMEM actually needed: double-buffered input + output blocks + alpha + slack.
    block_bytes = br * bn * itemsize
    vmem_limit = min(max(4 * block_bytes + (2 << 20), 8 << 20), 32 << 20)

    cost = pl.CostEstimate(
        flops=2 * x.size,
        transcendentals=0,
        bytes_accessed=2 * x.size * itemsize + a_rows.size * itemsize,
    )

    out2 = pl.pallas_call(
        _alpha_htanh_kernel,
        out_shape=jax.ShapeDtypeStruct((R, HW), dtype),
        grid_spec=pltpu.PrefetchScalarGridSpec(
            num_scalar_prefetch=0,
            grid=grid,
            in_specs=[
                pl.BlockSpec((br, bn), lambda r, j: (r, j)),
                pl.BlockSpec((br, 1), lambda r, j: (r, 0)),
            ],
            out_specs=pl.BlockSpec((br, bn), lambda r, j: (r, j)),
        ),
        compiler_params=pltpu.CompilerParams(
            dimension_semantics=("parallel", "parallel"),
            vmem_limit_bytes=vmem_limit,
        ),
        cost_estimate=cost,
    )(x2, a_rows)

    return out2.reshape(N, C, H, W)


def _reference(x, alpha):
    a = jnp.abs(alpha).reshape(1, -1, 1, 1).astype(x.dtype)
    return jnp.clip(x, -a, a)


if __name__ == "__main__":
    key = jax.random.PRNGKey(0)
    kx, ka, kx2, ka2 = jax.random.split(key, 4)

    # Primary case: small NCHW, spatial multiple of 128 lanes after flatten.
    N, C, H, W = 2, 4, 16, 16
    x = jax.random.normal(kx, (N, C, H, W), dtype=jnp.float32) * 2.0
    # Module inits alpha = ones(C); perturb deterministically so per-channel
    # thresholds differ and are exercised.
    alpha = jnp.ones((C,), dtype=jnp.float32) + 0.25 * jax.random.normal(
        ka, (C,), dtype=jnp.float32
    )

    out = alpha_htanh_channel(x, alpha)
    jax.block_until_ready(out)
    ref = _reference(x, alpha)
    assert out.shape == (N, C, H, W)
    assert out.dtype == x.dtype
    assert jnp.allclose(out, ref, atol=1e-6), "mismatch vs reference (aligned case)"

    # Secondary case: ragged shapes (C=3, 7x7 spatial) to exercise masked edge blocks.
    N2, C2, H2, W2 = 2, 3, 7, 7
    x_r = jax.random.normal(kx2, (N2, C2, H2, W2), dtype=jnp.float32) * 2.0
    alpha_r = jnp.ones((C2,), dtype=jnp.float32) + 0.25 * jax.random.normal(
        ka2, (C2,), dtype=jnp.float32
    )
    out_r = alpha_htanh_channel(x_r, alpha_r)
    jax.block_until_ready(out_r)
    assert jnp.allclose(out_r, _reference(x_r, alpha_r), atol=1e-6), (
        "mismatch vs reference (ragged case)"
    )

    print("KERNEL_OK")
</pallas_src>

<mosaic_0001>
module attributes {stable_mosaic.version = 11 : i64} {
  func.func @_alpha_htanh_kernel(%arg0: i32, %arg1: i32, %arg2: memref<8x256xf32, #tpu.memory_space<vmem>>, %arg3: memref<8x1xf32, #tpu.memory_space<vmem>>, %arg4: memref<8x256xf32, #tpu.memory_space<vmem>>) attributes {dimension_semantics = [#tpu.dimension_semantics<parallel>, #tpu.dimension_semantics<parallel>], iteration_bounds = array<i64: 1, 1>, scalar_prefetch = 0 : i64, scratch_operands = 0 : i64, tpu.core_type = #tpu.core_type<tc>, window_params = [{transform_indices = @transform_0, window_bounds = array<i64: 8, 256>}, {transform_indices = @transform_1, window_bounds = array<i64: 8, 1>}, {transform_indices = @transform_2, window_bounds = array<i64: 8, 256>}]} {
    %c0 = arith.constant 0 : index
    %c0_0 = arith.constant 0 : index
    %0 = vector.load %arg2[%c0, %c0_0] : memref<8x256xf32, #tpu.memory_space<vmem>>, vector<8x256xf32>
    %c0_1 = arith.constant 0 : index
    %c0_2 = arith.constant 0 : index
    %1 = vector.load %arg3[%c0_1, %c0_2] : memref<8x1xf32, #tpu.memory_space<vmem>>, vector<8x1xf32>
    %cst = arith.constant 0.000000e+00 : f32
    %2 = vector.broadcast %cst : f32 to vector<8x1xf32>
    %3 = arith.subf %2, %1 : vector<8x1xf32>
    %4 = vector.broadcast %3 : vector<8x1xf32> to vector<8x256xf32>
    %5 = arith.maximumf %0, %4 : vector<8x256xf32>
    %6 = vector.broadcast %1 : vector<8x1xf32> to vector<8x256xf32>
    %7 = arith.minimumf %5, %6 : vector<8x256xf32>
    %c0_3 = arith.constant 0 : index
    %c0_4 = arith.constant 0 : index
    %8 = vector.load %arg4[%c0_3, %c0_4] : memref<8x256xf32, #tpu.memory_space<vmem>>, vector<8x256xf32>
    tpu.vector_store %arg4[%c0_3, %c0_4], %7 {strides = array<i32>} : memref<8x256xf32, #tpu.memory_space<vmem>>, vector<8x256xf32>,
    return
  }
  func.func @transform_0(%arg0: i32, %arg1: i32) -> (i32, i32) {
    %c0_i32 = arith.constant 0 : i32
    return %arg0, %arg1 : i32, i32
  }
  func.func @transform_1(%arg0: i32, %arg1: i32) -> (i32, i32) {
    %c0_i32 = arith.constant 0 : i32
    %c0_i32_0 = arith.constant 0 : i32
    return %arg0, %c0_i32 : i32, i32
  }
  func.func @transform_2(%arg0: i32, %arg1: i32) -> (i32, i32) {
    %c0_i32 = arith.constant 0 : i32
    return %arg0, %arg1 : i32, i32
  }
}

</mosaic_0001>

<llo_original>
// kernel: tpu_custom_call.1
$region0: #{tpu_custom_call.1}
  #allocation0 [shape = 'u32[]', space=smem, size = 0x4, offset = 0x4, fixed_abs, tag = 'smem constant byte address 0x4 - core index']
  #allocation1 [shape = 'u32[144,128]{1,0:T(1,128)}', space=vmem, size = 0x12000, scoped, tag = 'internal scratch']
  %s0 = inlined_call_operand.hbm [shape: f32[8,256], index: 0, kind: input, shape index: {}]
  %s1 = inlined_call_operand.vmem [shape: f32[8,1], index: 1, kind: input, shape index: {}]
  %s2 = inlined_call_operand.hbm [shape: f32[8,256], index: 2, kind: output, shape index: {}]
  %s3 = sld [smem:[#allocation0]]
  $region22: #{tpu_custom_call.1} parent=0
    _
  %s5 = ssub.s32 1, %s3
  %s6 = scalar_select 0, %s5, %s3
  $region1: #{tpu_custom_call.1} parent=0
    #allocation2 [shape = 'u8[8192]{0}', space=vmem, size = 0x2000, scoped, tag = 'input window, operand 0, single buffered']
    #allocation3 [shape = 's32[1]{0}', space=sflag, size = 0x4, scoped, tag = 'scoped memory for tpu_custom_call.1']
    #allocation4 [shape = 's32[1]{0}', space=sflag, size = 0x4, scoped, tag = 'scoped memory for tpu_custom_call.1']
    #allocation5 [shape = 'u8[8192]{0}', space=vmem, size = 0x2000, scoped, tag = 'output window, operand 0, single buffered']
    %7 = vsyncpa [#allocation3], 0
    %8 = vsyncpa [#allocation4], 0
    // Predicated region
    $region2: #{tpu_custom_call.1} parent=1 // pred_check
      _
    $region3: #{tpu_custom_call.1} parent=1 // pred_check_branch
      %10 = sbr.rel (0) target = $region5
    $region4: #{tpu_custom_call.1} parent=1 // pred_region
      %s12 = ssub.s32 256, 256
      %13 = vsyncadd [#allocation3], %s12
      %s15 = sshll.u32 [#allocation2], 4
      %s16 = int_to_ptr.vmem [resolvable:$true] %s15
      %18 = dma.hbm_to_vmem [thread:$0]  %s0, 256, %s16, [#allocation3]
    $region5: #{tpu_custom_call.1} parent=1 // pred_fallthru
      _
    // Predicated region
    $region6: #{tpu_custom_call.1} parent=1 // pred_check
      _
    $region7: #{tpu_custom_call.1} parent=1 // pred_check_branch
      %20 = sbr.rel (0) target = $region9
    $region8: #{tpu_custom_call.1} parent=1 // pred_region
      _
    $region9: #{tpu_custom_call.1} parent=1 // pred_fallthru
      _
    // Predicated region
    $region10: #{tpu_custom_call.1} parent=1 // pred_check
      _
    $region11: #{tpu_custom_call.1} parent=1 // pred_check_branch
      %22 = sbr.rel (0) target = $region13
    $region12: #{tpu_custom_call.1} parent=1 // pred_region
      %23 = dma.done [#allocation3], 256
    $region13: #{tpu_custom_call.1} parent=1 // pred_fallthru
      _
    %v24 = vld [vmem:[#allocation2] sm:$0xff]
    %v25 = vld [vmem:[#allocation2 + $0x8] sm:$0xff]
    %v26 = vld [vmem:[%s1] sm:$0xff]
    %v27 = vsub.f32 0.0, %v26
    %29 = vset.pattern.permute.xlu0 0
    %30 = vperm.xlu0 %29, %v27
    %v31 = vpop.permute.xlu0 %30
    %v33 = vmax.f32 %v24, %v31
    %v34 = vmax.f32 %v25, %v31
    %36 = vset.pattern.permute.xlu0 0
    %37 = vperm.xlu0 %36, %v26
    %v38 = vpop.permute.xlu0 %37
    %v40 = vmin.f32 %v33, %v38
    %v41 = vmin.f32 %v34, %v38
    %42 = vst [vmem:[#allocation5] sm:$0xff] %v40
    %43 = vst [vmem:[#allocation5 + $0x8] sm:$0xff] %v41
    // Predicated region
    $region14: #{tpu_custom_call.1} parent=1 // pred_check
      _
    $region15: #{tpu_custom_call.1} parent=1 // pred_check_branch
      %45 = sbr.rel (0) target = $region17
    $region16: #{tpu_custom_call.1} parent=1 // pred_region
      %s47 = ssub.s32 256, 256
      %48 = vsyncadd [#allocation4], %s47
      %s50 = sshll.u32 [#allocation5], 4
      %s51 = int_to_ptr.vmem [resolvable:$true] %s50
      %53 = dma.vmem_to_hbm [thread:$0]  %s51, 256, %s2, [#allocation4]
    $region17: #{tpu_custom_call.1} parent=1 // pred_fallthru
      _
    // Predicated region
    $region18: #{tpu_custom_call.1} parent=1 // pred_check
      _
    $region19: #{tpu_custom_call.1} parent=1 // pred_check_branch
      %55 = sbr.rel (0) target = $region21
    $region20: #{tpu_custom_call.1} parent=1 // pred_region
      %56 = dma.done [#allocation4], 256
    $region21: #{tpu_custom_call.1} parent=1 // pred_fallthru
      _
    %57 = vsyncpa [#allocation3], 1
    %58 = vsyncpa [#allocation4], 1

</llo_original>
